<compile_context>
chip_gen: v7x
topology: tpu7x:2x2x1
jax: 0.10.0
libtpu: 0.0.40
codegen_flags: <defaults>
</compile_context>

<pallas_src>
import math
import warnings

import jax
import jax.numpy as jnp
from jax.experimental import pallas as pl
from jax.experimental.pallas import tpu as pltpu


def _round_up(x, m):
    return -(-x // m) * m


def _round_down(x, m):
    return (x // m) * m


# ---------------------------------------------------------------------------
# Kernel bodies
# ---------------------------------------------------------------------------
def _make_rmsnorm_kernel(*, eps, inv_h, has_residual, chunk, n_chunks):
    """Build the kernel body.

    n_chunks > 1 selects the two-pass, lane-chunked variant used for sub-f32
    dtypes: pass 1 accumulates sum(x^2) per row chunk-by-chunk, pass 2
    re-reads each chunk, upcasts, scales and stores -- the full (br, h) f32
    copy of x is never materialized.
    """
    if n_chunks <= 1:
        if has_residual:
            def kernel(x_ref, r_ref, w_ref, o_ref):
                x = x_ref[...].astype(jnp.float32) + r_ref[...].astype(jnp.float32)
                ss = jnp.sum(x * x, axis=-1, keepdims=True)       # XLU reduce
                inv = jax.lax.rsqrt(ss * inv_h + eps)             # EUP rsqrt
                o_ref[...] = (x * inv * w_ref[...].astype(jnp.float32)
                              ).astype(o_ref.dtype)
        else:
            def kernel(x_ref, w_ref, o_ref):
                x = x_ref[...].astype(jnp.float32)                # no-op for f32
                ss = jnp.sum(x * x, axis=-1, keepdims=True)
                inv = jax.lax.rsqrt(ss * inv_h + eps)
                o_ref[...] = (x * inv * w_ref[...].astype(jnp.float32)
                              ).astype(o_ref.dtype)
        return kernel

    def _f32_chunk(ref, c):
        # Static lane slice (multiple of 128) of the VMEM tile, upcast to f32.
        return ref[:, c * chunk:(c + 1) * chunk].astype(jnp.float32)

    if has_residual:
        def kernel(x_ref, r_ref, w_ref, o_ref):
            br = x_ref.shape[0]
            ss = jnp.zeros((br, 1), jnp.float32)
            for c in range(n_chunks):                             # static unroll
                xc = _f32_chunk(x_ref, c) + _f32_chunk(r_ref, c)
                ss = ss + jnp.sum(xc * xc, axis=-1, keepdims=True)
            inv = jax.lax.rsqrt(ss * inv_h + eps)
            for c in range(n_chunks):
                xc = _f32_chunk(x_ref, c) + _f32_chunk(r_ref, c)
                wc = _f32_chunk(w_ref, c)
                o_ref[:, c * chunk:(c + 1) * chunk] = (xc * inv * wc
                                                       ).astype(o_ref.dtype)
    else:
        def kernel(x_ref, w_ref, o_ref):
            br = x_ref.shape[0]
            ss = jnp.zeros((br, 1), jnp.float32)
            for c in range(n_chunks):
                xc = _f32_chunk(x_ref, c)
                ss = ss + jnp.sum(xc * xc, axis=-1, keepdims=True)
            inv = jax.lax.rsqrt(ss * inv_h + eps)
            for c in range(n_chunks):
                xc = _f32_chunk(x_ref, c)
                wc = _f32_chunk(w_ref, c)
                o_ref[:, c * chunk:(c + 1) * chunk] = (xc * inv * wc
                                                       ).astype(o_ref.dtype)
    return kernel


def _pick_chunk(h, itemsize):
    """Lane-chunk size for the two-pass sub-f32 kernel (128-multiple divisor
    of h), or (h, 1) to use the single-pass kernel."""
    if itemsize >= 4 or h % 128 != 0:
        return h, 1
    for c in (512, 384, 256, 128):
        if h % c == 0 and h // c >= 2:
            return c, h // c
    return h, 1


# ---------------------------------------------------------------------------
# Tiling / VMEM sizing
# ---------------------------------------------------------------------------
_MIN_STEP_BYTES = 2 << 20        # keep each grid step's DMA >= ~2 MiB


def _choose_block_rows(rows, h, itemsize, n_streams, temp_bytes_per_row,
                       max_block_rows=None):
    """Row-tile size: reaches the HBM roofline with a small, VMEM-friendly
    footprint and keeps >= 2 (preferably >= 8) balanced grid steps so both
    v7x TensorCores stay fed."""
    packing = max(1, 32 // itemsize)          # 8 f32 / 16 bf16 / 32 int8 rows
    if rows <= packing:
        return rows                            # single full-extent block
    rows_aligned = _round_down(rows, packing)

    # ~12-16 MiB of double-buffered tiles already hits the measured HBM
    # roofline; bigger tiles only eat VMEM (scarce on v7x: 64 MiB/TC).
    budget = min(16 << 20, max(12 << 20, n_streams * (5 << 20)))
    bytes_per_row = n_streams * 2 * h * itemsize + temp_bytes_per_row
    br = max(packing, _round_down(budget // max(1, bytes_per_row), packing))
    br = min(br, rows_aligned)

    # Roofline floor: per-step DMA >= _MIN_STEP_BYTES so the ~0.35us per-step
    # overhead stays negligible.
    step_bytes_per_row = n_streams * h * itemsize
    min_br = _round_up(pl.cdiv(_MIN_STEP_BYTES, max(1, step_bytes_per_row)),
                       packing)
    min_br = min(min_br, rows_aligned)

    # v7x: 2 TensorCores share one HBM -- prefer >= 8 (else >= 2) balanced
    # blocks along the "parallel" grid axis, but never below the roofline floor.
    for target in (8, 2):
        cap = _round_up(pl.cdiv(rows, target), packing)
        if cap >= min_br:
            br = min(br, cap)
            break

    if max_block_rows is not None:
        br = min(br, max(packing, _round_down(max_block_rows, packing)))
    return max(packing, br)


def _vmem_capacity_bytes():
    try:
        return int(pltpu.get_tpu_info().vmem_capacity_bytes)
    except Exception:
        return 64 << 20        # conservative fallback = v7x per-TC VMEM


# ---------------------------------------------------------------------------
# Public wrapper
# ---------------------------------------------------------------------------
def fused_rms_norm(x, weight, normalized_shape, eps=1e-5, residual=None,
                   max_block_rows=None):
    """Pallas TPU forward for apex FusedRMSNorm (elementwise_affine)."""
    if isinstance(normalized_shape, int):
        normalized_shape = (normalized_shape,)
    normalized_shape = tuple(normalized_shape)
    nd = len(normalized_shape)
    h = int(math.prod(normalized_shape))
    assert tuple(x.shape[-nd:]) == normalized_shape
    assert tuple(weight.shape) == normalized_shape
    if residual is not None:
        assert residual.shape == x.shape

    # Lane-density guard: non-128-multiple h means masked vst.msk writeback.
    if h >= 1024 and h % 128 != 0:
        warnings.warn(
            "fused_rms_norm: normalized size %d is not a multiple of 128; "
            "output writeback will use masked partial stores (slow)." % h)

    orig_shape = x.shape
    rows = int(math.prod(x.shape[:-nd])) if len(x.shape) > nd else 1

    x2 = x.reshape(rows, h)
    w2 = weight.reshape(1, h)
    r2 = residual.reshape(rows, h) if residual is not None else None

    itemsize = jnp.dtype(x.dtype).itemsize
    w_itemsize = jnp.dtype(weight.dtype).itemsize
    n_streams = 2 if residual is None else 3            # row streams: in(s)+out

    chunk, n_chunks = _pick_chunk(h, itemsize)
    if n_chunks > 1:
        temp_bytes_per_row = 16 * chunk                  # a few f32 chunk temps
    elif itemsize >= 4:
        temp_bytes_per_row = 4 * h                       # one f32 result tile
    else:
        temp_bytes_per_row = 8 * h                       # f32 upcast + result

    br = _choose_block_rows(rows, h, itemsize, n_streams, temp_bytes_per_row,
                            max_block_rows)
    n_blocks = pl.cdiv(rows, br)                         # ragged last block OK
    # (RMSNorm is row-independent: padded rows are read-padded / write-masked.)

    # VMEM actually touched: double-buffered row tiles + weight + f32 temps.
    tile_bytes = (2 * n_streams * br * h * itemsize      # double-buffered tiles
                  + 2 * h * w_itemsize                   # weight double-buffer
                  + br * temp_bytes_per_row)             # in-kernel f32 temps
    vmem_cap = _vmem_capacity_bytes()
    vmem_limit = int(min(int(0.65 * vmem_cap),           # ~41 MiB cap on v7x
                         int(2.5 * tile_bytes) + (2 << 20)))
    vmem_limit = max(vmem_limit, 16 << 20)               # v5e default floor

    row_spec = pl.BlockSpec((br, h), lambda i: (i, 0))
    w_spec = pl.BlockSpec((1, h), lambda i: (0, 0))
    out_shape = jax.ShapeDtypeStruct((rows, h), x.dtype)
    params = pltpu.CompilerParams(
        dimension_semantics=("parallel",),               # shards across v7x TCs
        vmem_limit_bytes=vmem_limit)
    cost = pl.CostEstimate(
        flops=(5 if residual is not None else 4) * rows * h,
        transcendentals=rows,
        bytes_accessed=n_streams * rows * h * itemsize + h * w_itemsize)

    kernel = _make_rmsnorm_kernel(eps=float(eps), inv_h=1.0 / float(h),
                                  has_residual=residual is not None,
                                  chunk=chunk, n_chunks=n_chunks)

    if residual is None:
        operands = (x2, w2)
        in_specs = [row_spec, w_spec]
    else:
        operands = (x2, r2, w2)
        in_specs = [row_spec, row_spec, w_spec]

    out = pl.pallas_call(
        kernel,
        grid=(n_blocks,),
        in_specs=in_specs,
        out_specs=row_spec,
        out_shape=out_shape,
        compiler_params=params,
        cost_estimate=cost,
    )(*operands)

    return out.reshape(orig_shape)


# ---------------------------------------------------------------------------
# Reference + self-test
# ---------------------------------------------------------------------------
def _reference(x, weight, eps, residual=None):
    xf = x.astype(jnp.float32)
    if residual is not None:
        xf = xf + residual.astype(jnp.float32)
    ms = jnp.mean(xf * xf, axis=-1, keepdims=True)
    return (xf * jax.lax.rsqrt(ms + eps) * weight.astype(jnp.float32)
            ).astype(x.dtype)


if __name__ == "__main__":
    key = jax.random.PRNGKey(0)
    keys = jax.random.split(key, 8)
    eps = 1e-5

    # --- main case: f32, batch=2, seq=8, hidden=32 (weight = ones, matching
    #     FusedRMSNorm.reset_parameters), with and without fused residual ---
    batch, seq, hidden = 2, 8, 32
    normalized_shape = (hidden,)
    x = jax.random.normal(keys[0], (batch, seq, hidden), dtype=jnp.float32)
    residual = jax.random.normal(keys[1], (batch, seq, hidden), dtype=jnp.float32)
    weight = jnp.ones(normalized_shape, dtype=jnp.float32)

    out = jax.block_until_ready(fused_rms_norm(x, weight, normalized_shape, eps=eps))
    out_res = jax.block_until_ready(
        fused_rms_norm(x, weight, normalized_shape, eps=eps, residual=residual))
    assert jnp.allclose(out, _reference(x, weight, eps), atol=1e-5, rtol=1e-5)
    assert jnp.allclose(out_res, _reference(x, weight, eps, residual),
                        atol=1e-5, rtol=1e-5)

    # --- ragged-grid case: rows=12 with 8-row blocks (no host padding) ---
    xr = jax.random.normal(keys[2], (3, 4, hidden), dtype=jnp.float32)
    wr = jax.random.normal(keys[3], normalized_shape, dtype=jnp.float32)
    out_ragged = jax.block_until_ready(
        fused_rms_norm(xr, wr, normalized_shape, eps=eps, max_block_rows=8))
    assert jnp.allclose(out_ragged, _reference(xr, wr, eps), atol=1e-5, rtol=1e-5)

    # --- bf16, hidden=128 (lane-dense, single-pass kernel) ---
    hb = 128
    xb = jax.random.normal(keys[4], (2, 8, hb), dtype=jnp.bfloat16)
    wb = jnp.ones((hb,), dtype=jnp.bfloat16)
    out_bf16 = jax.block_until_ready(fused_rms_norm(xb, wb, (hb,), eps=eps))
    assert jnp.allclose(out_bf16.astype(jnp.float32),
                        _reference(xb, wb, eps).astype(jnp.float32),
                        atol=2e-2, rtol=2e-2)

    # --- bf16, hidden=256: exercises the two-pass lane-chunked kernel ---
    hc = 256
    xc = jax.random.normal(keys[5], (4, 16, hc), dtype=jnp.bfloat16)
    rc = jax.random.normal(keys[6], (4, 16, hc), dtype=jnp.bfloat16)
    wc = jax.random.normal(keys[7], (hc,), dtype=jnp.bfloat16)
    out_c = jax.block_until_ready(fused_rms_norm(xc, wc, (hc,), eps=eps))
    out_cr = jax.block_until_ready(
        fused_rms_norm(xc, wc, (hc,), eps=eps, residual=rc))
    assert jnp.allclose(out_c.astype(jnp.float32),
                        _reference(xc, wc, eps).astype(jnp.float32),
                        atol=2e-2, rtol=2e-2)
    assert jnp.allclose(out_cr.astype(jnp.float32),
                        _reference(xc, wc, eps, rc).astype(jnp.float32),
                        atol=2e-2, rtol=2e-2)

    print("KERNEL_OK")
</pallas_src>

<mosaic_0001>
module attributes {stable_mosaic.version = 11 : i64} {
  func.func @kernel(%arg0: i32, %arg1: memref<16x32xf32, #tpu.memory_space<vmem>>, %arg2: memref<1x32xf32, #tpu.memory_space<vmem>>, %arg3: memref<16x32xf32, #tpu.memory_space<vmem>>) attributes {dimension_semantics = [#tpu.dimension_semantics<parallel>], iteration_bounds = array<i64: 1>, scalar_prefetch = 0 : i64, scratch_operands = 0 : i64, tpu.core_type = #tpu.core_type<tc>, window_params = [{transform_indices = @transform_0, window_bounds = array<i64: 16, 32>}, {pipeline_mode = #tpu.pipeline_mode<synchronous>, transform_indices = @transform_1, window_bounds = array<i64: 1, 32>}, {transform_indices = @transform_2, window_bounds = array<i64: 16, 32>}]} {
    %c0 = arith.constant 0 : index
    %c0_0 = arith.constant 0 : index
    %0 = vector.load %arg1[%c0, %c0_0] : memref<16x32xf32, #tpu.memory_space<vmem>>, vector<16x32xf32>
    %1 = arith.mulf %0, %0 : vector<16x32xf32>
    %cst = arith.constant dense<0.000000e+00> : vector<16xf32>
    %2 = vector.multi_reduction <add>, %1, %cst [1] : vector<16x32xf32> to vector<16xf32>
    %3 = vector.shape_cast %2 : vector<16xf32> to vector<16x1xf32>
    %cst_1 = arith.constant 3.125000e-02 : f32
    %4 = vector.broadcast %cst_1 : f32 to vector<16x1xf32>
    %5 = arith.mulf %3, %4 : vector<16x1xf32>
    %cst_2 = arith.constant 9.99999974E-6 : f32
    %6 = vector.broadcast %cst_2 : f32 to vector<16x1xf32>
    %7 = arith.addf %5, %6 : vector<16x1xf32>
    %8 = math.rsqrt %7 : vector<16x1xf32>
    %9 = vector.broadcast %8 : vector<16x1xf32> to vector<16x32xf32>
    %10 = arith.mulf %0, %9 : vector<16x32xf32>
    %c0_3 = arith.constant 0 : index
    %c0_4 = arith.constant 0 : index
    %11 = vector.load %arg2[%c0_3, %c0_4] : memref<1x32xf32, #tpu.memory_space<vmem>>, vector<1x32xf32>
    %12 = vector.broadcast %11 : vector<1x32xf32> to vector<16x32xf32>
    %13 = arith.mulf %10, %12 : vector<16x32xf32>
    %c0_5 = arith.constant 0 : index
    %c0_6 = arith.constant 0 : index
    %14 = vector.load %arg3[%c0_5, %c0_6] : memref<16x32xf32, #tpu.memory_space<vmem>>, vector<16x32xf32>
    tpu.vector_store %arg3[%c0_5, %c0_6], %13 {strides = array<i32>} : memref<16x32xf32, #tpu.memory_space<vmem>>, vector<16x32xf32>,
    return
  }
  func.func @transform_0(%arg0: i32) -> (i32, i32) {
    %c0_i32 = arith.constant 0 : i32
    %c0_i32_0 = arith.constant 0 : i32
    return %arg0, %c0_i32 : i32, i32
  }
  func.func @transform_1(%arg0: i32) -> (i32, i32) {
    %c0_i32 = arith.constant 0 : i32
    %c0_i32_0 = arith.constant 0 : i32
    %c0_i32_1 = arith.constant 0 : i32
    return %c0_i32, %c0_i32_0 : i32, i32
  }
  func.func @transform_2(%arg0: i32) -> (i32, i32) {
    %c0_i32 = arith.constant 0 : i32
    %c0_i32_0 = arith.constant 0 : i32
    return %arg0, %c0_i32 : i32, i32
  }
}

</mosaic_0001>

<llo_original>
// kernel: tpu_custom_call.1
$region0: #{tpu_custom_call.1}
  #allocation0 [shape = 'u32[]', space=smem, size = 0x4, offset = 0x4, fixed_abs, tag = 'smem constant byte address 0x4 - core index']
  #allocation1 [shape = 'u32[144,128]{1,0:T(1,128)}', space=vmem, size = 0x12000, scoped, tag = 'internal scratch']
  %s0 = inlined_call_operand.hbm [shape: f32[16,32], index: 0, kind: input, shape index: {}]
  %s1 = inlined_call_operand.vmem [shape: f32[1,32], index: 1, kind: input, shape index: {}]
  %s2 = inlined_call_operand.hbm [shape: f32[16,32], index: 2, kind: output, shape index: {}]
  %s3 = sld [smem:[#allocation0]]
  $region22: #{tpu_custom_call.1} parent=0
    _
  %s5 = ssub.s32 1, %s3
  %s6 = scalar_select 0, %s5, %s3
  $region1: #{tpu_custom_call.1} parent=0
    #allocation2 [shape = 'u8[8192]{0}', space=vmem, size = 0x2000, scoped, tag = 'input window, operand 0, single buffered']
    #allocation3 [shape = 's32[1]{0}', space=sflag, size = 0x4, scoped, tag = 'scoped memory for tpu_custom_call.1']
    #allocation4 [shape = 's32[1]{0}', space=sflag, size = 0x4, scoped, tag = 'scoped memory for tpu_custom_call.1']
    #allocation5 [shape = 'u8[8192]{0}', space=vmem, size = 0x2000, scoped, tag = 'output window, operand 0, single buffered']
    %7 = vsyncpa [#allocation3], 0
    %8 = vsyncpa [#allocation4], 0
    // Predicated region
    $region2: #{tpu_custom_call.1} parent=1 // pred_check
      _
    $region3: #{tpu_custom_call.1} parent=1 // pred_check_branch
      %10 = sbr.rel (0) target = $region5
    $region4: #{tpu_custom_call.1} parent=1 // pred_region
      %s12 = ssub.s32 256, 256
      %13 = vsyncadd [#allocation3], %s12
      %s14 = sshll.u32 [#allocation2], 4
      %s15 = int_to_ptr.vmem [resolvable:$true] %s14
      %20 = dma.hbm_to_vmem [thread:$0]  %s0, 256, %s15, [#allocation3], 128, 128, 8
    $region5: #{tpu_custom_call.1} parent=1 // pred_fallthru
      _
    // Predicated region
    $region6: #{tpu_custom_call.1} parent=1 // pred_check
      _
    $region7: #{tpu_custom_call.1} parent=1 // pred_check_branch
      %22 = sbr.rel (0) target = $region9
    $region8: #{tpu_custom_call.1} parent=1 // pred_region
      _
    $region9: #{tpu_custom_call.1} parent=1 // pred_fallthru
      _
    // Predicated region
    $region10: #{tpu_custom_call.1} parent=1 // pred_check
      _
    $region11: #{tpu_custom_call.1} parent=1 // pred_check_branch
      %24 = sbr.rel (0) target = $region13
    $region12: #{tpu_custom_call.1} parent=1 // pred_region
      %25 = dma.done [#allocation3], 256
    $region13: #{tpu_custom_call.1} parent=1 // pred_fallthru
      _
    %v26 = vld [vmem:[#allocation2] sm:$0xff]
    %v27 = vld [vmem:[#allocation2 + $0x8] sm:$0xff]
    %v28 = vmul.f32 %v26, %v26
    %v29 = vmul.f32 %v27, %v27
    %vm30 = vcmask 261120
    %v31 = vsel %vm30, %v28, 0.0
    %32 = vadd.xlane.f32.xlu0 %v31
    %v33 = vpop.xlane.xlu0 %32
    %v34 = vsel %vm30, %v29, 0.0
    %35 = vadd.xlane.f32.xlu0 %v34
    %v36 = vpop.xlane.xlu0 %35
    %v37 = vmul.f32 %v33, 0.03125
    %v38 = vmul.f32 %v36, 0.03125
    %v39 = vadd.f32 %v37, 1e-05
    %v40 = vadd.f32 %v38, 1e-05
    %v41 = vrsqrt.pop %v39
    %v42 = vrsqrt.pop %v40
    %v43 = vmul.f32 %v26, %v41
    %v44 = vmul.f32 %v27, %v42
    %v45 = vld [vmem:[%s1] sm:$0x1]
    %v47 = vlaneseq
    %v48 = vshrl.u32 %v47, 7
    %v49 = vsub.s32 0, %v48
    %v50 = vrot.slane %v45, %v49
    %v52 = vmul.f32 %v43, %v50
    %v53 = vmul.f32 %v44, %v50
    %54 = vst.msk [vmem:[#allocation5] sm:$0xff] %vm30, %v52
    %55 = vst.msk [vmem:[#allocation5 + $0x8] sm:$0xff] %vm30, %v53
    // Predicated region
    $region14: #{tpu_custom_call.1} parent=1 // pred_check
      _
    $region15: #{tpu_custom_call.1} parent=1 // pred_check_branch
      %57 = sbr.rel (0) target = $region17
    $region16: #{tpu_custom_call.1} parent=1 // pred_region
      %s59 = ssub.s32 256, 256
      %60 = vsyncadd [#allocation4], %s59
      %s61 = sshll.u32 [#allocation5], 4
      %s62 = int_to_ptr.vmem [resolvable:$true] %s61
      %67 = dma.vmem_to_hbm [thread:$0]  %s62, 256, %s2, [#allocation4], 128, 128, 8
    $region17: #{tpu_custom_call.1} parent=1 // pred_fallthru
      _
    // Predicated region
    $region18: #{tpu_custom_call.1} parent=1 // pred_check
      _
    $region19: #{tpu_custom_call.1} parent=1 // pred_check_branch
      %69 = sbr.rel (0) target = $region21
    $region20: #{tpu_custom_call.1} parent=1 // pred_region
      %70 = dma.done [#allocation4], 256
    $region21: #{tpu_custom_call.1} parent=1 // pred_fallthru
      _
    %71 = vsyncpa [#allocation3], 1
    %72 = vsyncpa [#allocation4], 1

</llo_original>
